<compile_context>
chip_gen: v7x
topology: tpu7x:2x2x1
jax: 0.10.0
libtpu: 0.0.40
codegen_flags: <defaults>
</compile_context>

<pallas_src>
import functools

import jax
import jax.numpy as jnp
from jax.experimental import pallas as pl
from jax.experimental.pallas import tpu as pltpu

NEG_SLOPE = 0.01  # PyTorch nn.LeakyReLU default
_LANE = 128


def _round_up(x, m):
    return ((x + m - 1) // m) * m


def _leaky_relu(v):
    # max(v, a*v) == LeakyReLU(v) for 0 < a < 1; 2 VALU ops instead of 3.
    return jnp.maximum(v, NEG_SLOPE * v)


def _layer(w_ref, h, b_ref):
    w = w_ref[...]
    if w.dtype != jnp.float32:          # opt-in bf16 matmul inputs
        h = h.astype(w.dtype)
    return jnp.dot(w, h, preferred_element_type=jnp.float32) + b_ref[...]


def mlp_kernel(x_ref,
               w1_ref, b1_ref,
               w2_ref, b2_ref,
               w3_ref, b3_ref,
               w4_ref, b4_ref,
               w5_ref, b5_ref,
               o_ref):
    """Fused feature-major forward for one batch tile (batch on the lane axis).

    x_ref: (in_dim, tile).  Weights are PyTorch-layout (out, in), biases (out, 1).
    o_ref: (2, tile) -> lane-dense store.
    """
    h = x_ref[...].astype(jnp.float32)

    # projection_head: Linear(in,64) -> LeakyReLU -> Linear(64,128)
    h = _leaky_relu(_layer(w1_ref, h, b1_ref))
    h = _layer(w2_ref, h, b2_ref)
    # self.relu (LeakyReLU) applied to the projection_head output
    h = _leaky_relu(h)
    # output_layer: Linear(128,64)->LReLU->Linear(64,16)->LReLU->Linear(16,2)
    h = _leaky_relu(_layer(w3_ref, h, b3_ref))
    h = _leaky_relu(_layer(w4_ref, h, b4_ref))
    h = _layer(w5_ref, h, b5_ref)

    o_ref[...] = h.astype(o_ref.dtype)


def _num_tensorcores():
    """2 for dual-TensorCore chips (v7x); 1 otherwise (conservative fallback)."""
    try:
        kind = jax.devices()[0].device_kind.lower().replace(" ", "")
        if "v7" in kind or "tpu7" in kind:
            return 2
    except Exception:
        pass
    return 1


def _choose_batch_tile(batch, num_tc, target=8192):
    """Tile is a multiple of 128 (batch sits on the lane axis).

    Single-TC chips (v5e/v6e): the grid is a serial loop -> one step if it fits.
    Dual-TC chips (v7x): aim for an even number (>=2) of 'parallel' grid steps.
    """
    if num_tc <= 1:
        return min(_round_up(batch, _LANE), target)
    if batch <= _LANE:
        return _LANE
    steps = max(2, pl.cdiv(_round_up(batch, _LANE), target))
    if steps % 2:
        steps += 1
    return max(_LANE, _round_up(pl.cdiv(batch, steps), _LANE))


def _padded_tile_bytes(shape, itemsize):
    """VMEM footprint of a 2-D block after (8,128) minor-dim tile padding."""
    sub = _round_up(int(shape[0]), 8)
    lane = _round_up(int(shape[1]), _LANE)
    return sub * lane * itemsize


def _vmem_bytes_estimate(tile, in_dim, flat_params, param_buf_count):
    # double-buffered (in_dim, tile) input and (2, tile) output blocks
    io = 2 * _padded_tile_bytes((in_dim, tile), 4) + 2 * _padded_tile_bytes((2, tile), 4)
    # ~3 live f32 activation slabs, widest hidden = 128 rows
    act = 3 * _padded_tile_bytes((128, tile), 4)
    params = sum(param_buf_count * _padded_tile_bytes(p.shape, p.dtype.itemsize)
                 for p in flat_params)
    return io + act + params


@functools.lru_cache(maxsize=1)
def _single_buffering_supported():
    """Probe once whether pl.Buffered(1) on a constant-index operand compiles/runs."""
    if not hasattr(pl, "Buffered"):
        return False
    try:
        const_spec = pl.BlockSpec((8, _LANE), lambda i: (0, 0),
                                  pipeline_mode=pl.Buffered(1))

        def probe(c_ref, x_ref, o_ref):
            o_ref[...] = x_ref[...] + c_ref[...]

        f = pl.pallas_call(
            probe,
            out_shape=jax.ShapeDtypeStruct((16, _LANE), jnp.float32),
            grid=(2,),
            in_specs=[const_spec, pl.BlockSpec((8, _LANE), lambda i: (i, 0))],
            out_specs=pl.BlockSpec((8, _LANE), lambda i: (i, 0)),
        )
        jax.block_until_ready(f(jnp.zeros((8, _LANE), jnp.float32),
                                jnp.zeros((16, _LANE), jnp.float32)))
        return True
    except Exception:
        return False


def _pallas_forward(x_t, flat_params, tile, single_buffer_weights):
    in_dim, b_pad = x_t.shape
    grid = (b_pad // tile,)

    def const_spec(arr):
        kwargs = {}
        if single_buffer_weights:
            # Constant index_map across the grid -> one resident copy suffices.
            kwargs["pipeline_mode"] = pl.Buffered(1)
        return pl.BlockSpec(arr.shape, lambda i: (0, 0), **kwargs)

    in_specs = [pl.BlockSpec((in_dim, tile), lambda i: (0, i))]
    in_specs += [const_spec(arr) for arr in flat_params]
    out_spec = pl.BlockSpec((2, tile), lambda i: (0, i))

    flops = 2 * b_pad * (in_dim * 64 + 64 * 128 + 128 * 64 + 64 * 16 + 16 * 2)
    bytes_accessed = (4 * b_pad * (in_dim + 2)
                      + sum(int(a.size) * a.dtype.itemsize for a in flat_params))
    cost = pl.CostEstimate(flops=flops, transcendentals=0,
                           bytes_accessed=bytes_accessed)

    cp_kwargs = dict(dimension_semantics=("parallel",))
    buf_count = 1 if single_buffer_weights else 2
    vmem_est = _vmem_bytes_estimate(tile, in_dim, flat_params, buf_count)
    if vmem_est > (12 << 20):  # below v5e's 16 MiB default scoped-VMEM limit
        # Cap well under v7x's 64 MiB physical VMEM per TensorCore.
        cp_kwargs["vmem_limit_bytes"] = min(int(vmem_est * 3 // 2), 48 << 20)

    return pl.pallas_call(
        mlp_kernel,
        out_shape=jax.ShapeDtypeStruct((2, b_pad), jnp.float32),
        grid=grid,
        in_specs=in_specs,
        out_specs=out_spec,
        compiler_params=pltpu.CompilerParams(**cp_kwargs),
        cost_estimate=cost,
    )(x_t, *flat_params)


def simple_reg_network(x, params, *, batch_tile=None, use_bf16_matmul=False):
    """x: (B, in_channels) float32.

    params: dict name -> (w, b) with PyTorch layout: w (out_features, in_features),
    b (out_features, 1).  batch_tile, if given, must be a multiple of 128.
    use_bf16_matmul casts weights (and activations in-kernel) to bf16 for the MXU
    (~3x throughput on v6e/v7x) at the cost of exact f32 parity.
    """
    B, in_dim = x.shape
    num_tc = _num_tensorcores()
    tile = _choose_batch_tile(B, num_tc) if batch_tile is None else batch_tile

    # Ragged batch: pad to a tile multiple, slice the result back afterwards.
    b_pad = _round_up(B, tile)
    x_pad = jnp.pad(x, ((0, b_pad - B), (0, 0))) if b_pad != B else x
    # Feature-major: batch on the 128-lane axis (MXU N dim, lane-dense I/O).
    x_t = x_pad.T

    flat_params = []
    for name in ("l1", "l2", "l3", "l4", "l5"):
        w, b = params[name]
        if use_bf16_matmul:
            w = w.astype(jnp.bfloat16)
        flat_params += [w, b]

    out_t = _pallas_forward(x_t, flat_params, tile,
                            single_buffer_weights=_single_buffering_supported())
    return out_t.T[:B]


def init_params(key, in_channels):
    """Deterministic synthetic parameters with PyTorch nn.Linear layout:
    w (out_features, in_features), b (out_features, 1)."""
    dims = [(in_channels, 64), (64, 128), (128, 64), (64, 16), (16, 2)]
    names = ["l1", "l2", "l3", "l4", "l5"]
    params = {}
    for name, (fan_in, fan_out) in zip(names, dims):
        key, kw, kb = jax.random.split(key, 3)
        bound = 1.0 / jnp.sqrt(fan_in)  # PyTorch Linear default init range
        w = jax.random.uniform(kw, (fan_out, fan_in), jnp.float32, -bound, bound)
        b = jax.random.uniform(kb, (fan_out, 1), jnp.float32, -bound, bound)
        params[name] = (w, b)
    return params


def reference_forward(x, params):
    def lin(h, name):
        w, b = params[name]
        return h @ w.T + b.T
    h = _leaky_relu(lin(x, "l1"))
    h = lin(h, "l2")
    h = _leaky_relu(h)
    h = _leaky_relu(lin(h, "l3"))
    h = _leaky_relu(lin(h, "l4"))
    return lin(h, "l5")


if __name__ == "__main__":
    key = jax.random.PRNGKey(0)
    in_channels = 8

    key, kp = jax.random.split(key)
    params = init_params(kp, in_channels)

    # Deliberately ragged batches: exercise lane padding and (on v7x) multi-step grids.
    for batch in (13, 300):
        key, kx = jax.random.split(key)
        x = jax.random.normal(kx, (batch, in_channels), jnp.float32)

        out = jax.block_until_ready(simple_reg_network(x, params))
        ref = reference_forward(x, params)

        assert out.shape == (batch, 2)
        assert jnp.allclose(out, ref, atol=1e-4, rtol=1e-4), \
            f"mismatch vs reference at batch={batch}"

    print("KERNEL_OK")
</pallas_src>

<mosaic_0001>
module attributes {stable_mosaic.version = 11 : i64} {
  func.func @probe(%arg0: i32, %arg1: memref<8x128xf32, #tpu.memory_space<vmem>>, %arg2: memref<8x128xf32, #tpu.memory_space<vmem>>, %arg3: memref<8x128xf32, #tpu.memory_space<vmem>>) attributes {dimension_semantics = [#tpu.dimension_semantics<arbitrary>], iteration_bounds = array<i64: 2>, scalar_prefetch = 0 : i64, scratch_operands = 0 : i64, tpu.core_type = #tpu.core_type<tc>, window_params = [{pipeline_mode = #tpu.pipeline_mode<synchronous>, transform_indices = @transform_0, window_bounds = array<i64: 8, 128>}, {transform_indices = @transform_1, window_bounds = array<i64: 8, 128>}, {transform_indices = @transform_2, window_bounds = array<i64: 8, 128>}]} {
    %c0 = arith.constant 0 : index
    %c0_0 = arith.constant 0 : index
    %0 = vector.load %arg2[%c0, %c0_0] : memref<8x128xf32, #tpu.memory_space<vmem>>, vector<8x128xf32>
    %c0_1 = arith.constant 0 : index
    %c0_2 = arith.constant 0 : index
    %1 = vector.load %arg1[%c0_1, %c0_2] : memref<8x128xf32, #tpu.memory_space<vmem>>, vector<8x128xf32>
    %2 = arith.addf %0, %1 : vector<8x128xf32>
    %c0_3 = arith.constant 0 : index
    %c0_4 = arith.constant 0 : index
    %3 = vector.load %arg3[%c0_3, %c0_4] : memref<8x128xf32, #tpu.memory_space<vmem>>, vector<8x128xf32>
    tpu.vector_store %arg3[%c0_3, %c0_4], %2 {strides = array<i32>} : memref<8x128xf32, #tpu.memory_space<vmem>>, vector<8x128xf32>,
    return
  }
  func.func @transform_0(%arg0: i32) -> (i32, i32) {
    %c0_i32 = arith.constant 0 : i32
    %c0_i32_0 = arith.constant 0 : i32
    %c0_i32_1 = arith.constant 0 : i32
    return %c0_i32, %c0_i32_0 : i32, i32
  }
  func.func @transform_1(%arg0: i32) -> (i32, i32) {
    %c0_i32 = arith.constant 0 : i32
    %c0_i32_0 = arith.constant 0 : i32
    return %arg0, %c0_i32 : i32, i32
  }
  func.func @transform_2(%arg0: i32) -> (i32, i32) {
    %c0_i32 = arith.constant 0 : i32
    %c0_i32_0 = arith.constant 0 : i32
    return %arg0, %c0_i32 : i32, i32
  }
}

module attributes {stable_mosaic.version = 11 : i64} {
  func.func @mlp_kernel(%arg0: i32, %arg1: memref<8x128xf32, #tpu.memory_space<vmem>>, %arg2: memref<64x8xf32, #tpu.memory_space<vmem>>, %arg3: memref<64x1xf32, #tpu.memory_space<vmem>>, %arg4: memref<128x64xf32, #tpu.memory_space<vmem>>, %arg5: memref<128x1xf32, #tpu.memory_space<vmem>>, %arg6: memref<64x128xf32, #tpu.memory_space<vmem>>, %arg7: memref<64x1xf32, #tpu.memory_space<vmem>>, %arg8: memref<16x64xf32, #tpu.memory_space<vmem>>, %arg9: memref<16x1xf32, #tpu.memory_space<vmem>>, %arg10: memref<2x16xf32, #tpu.memory_space<vmem>>, %arg11: memref<2x1xf32, #tpu.memory_space<vmem>>, %arg12: memref<2x128xf32, #tpu.memory_space<vmem>>) attributes {dimension_semantics = [#tpu.dimension_semantics<parallel>], iteration_bounds = array<i64: 1>, scalar_prefetch = 0 : i64, scratch_operands = 0 : i64, tpu.core_type = #tpu.core_type<tc>, window_params = [{transform_indices = @transform_0, window_bounds = array<i64: 8, 128>}, {pipeline_mode = #tpu.pipeline_mode<synchronous>, transform_indices = @transform_1, window_bounds = array<i64: 64, 8>}, {pipeline_mode = #tpu.pipeline_mode<synchronous>, transform_indices = @transform_2, window_bounds = array<i64: 64, 1>}, {pipeline_mode = #tpu.pipeline_mode<synchronous>, transform_indices = @transform_3, window_bounds = array<i64: 128, 64>}, {pipeline_mode = #tpu.pipeline_mode<synchronous>, transform_indices = @transform_4, window_bounds = array<i64: 128, 1>}, {pipeline_mode = #tpu.pipeline_mode<synchronous>, transform_indices = @transform_5, window_bounds = array<i64: 64, 128>}, {pipeline_mode = #tpu.pipeline_mode<synchronous>, transform_indices = @transform_6, window_bounds = array<i64: 64, 1>}, {pipeline_mode = #tpu.pipeline_mode<synchronous>, transform_indices = @transform_7, window_bounds = array<i64: 16, 64>}, {pipeline_mode = #tpu.pipeline_mode<synchronous>, transform_indices = @transform_8, window_bounds = array<i64: 16, 1>}, {pipeline_mode = #tpu.pipeline_mode<synchronous>, transform_indices = @transform_9, window_bounds = array<i64: 2, 16>}, {pipeline_mode = #tpu.pipeline_mode<synchronous>, transform_indices = @transform_10, window_bounds = array<i64: 2, 1>}, {transform_indices = @transform_11, window_bounds = array<i64: 2, 128>}]} {
    %c0 = arith.constant 0 : index
    %c0_0 = arith.constant 0 : index
    %0 = vector.load %arg1[%c0, %c0_0] : memref<8x128xf32, #tpu.memory_space<vmem>>, vector<8x128xf32>
    %c0_1 = arith.constant 0 : index
    %c0_2 = arith.constant 0 : index
    %1 = vector.load %arg2[%c0_1, %c0_2] : memref<64x8xf32, #tpu.memory_space<vmem>>, vector<64x8xf32>
    %cst = arith.constant dense<0.000000e+00> : vector<64x128xf32>
    %2 = tpu.matmul %1, %0, %cst {dimension_numbers = #tpu.dot_dimension_numbers<[1], [0], [0], [1], [0, 0, 1, 1], [], []>} : vector<64x8xf32>, vector<8x128xf32>, vector<64x128xf32> -> vector<64x128xf32>
    %c0_3 = arith.constant 0 : index
    %c0_4 = arith.constant 0 : index
    %3 = vector.load %arg3[%c0_3, %c0_4] : memref<64x1xf32, #tpu.memory_space<vmem>>, vector<64x1xf32>
    %4 = vector.broadcast %3 : vector<64x1xf32> to vector<64x128xf32>
    %5 = arith.addf %2, %4 : vector<64x128xf32>
    %cst_5 = arith.constant 0.00999999977 : f32
    %6 = vector.broadcast %cst_5 : f32 to vector<64x128xf32>
    %7 = arith.mulf %6, %5 : vector<64x128xf32>
    %8 = arith.maximumf %5, %7 : vector<64x128xf32>
    %c0_6 = arith.constant 0 : index
    %c0_7 = arith.constant 0 : index
    %9 = vector.load %arg4[%c0_6, %c0_7] : memref<128x64xf32, #tpu.memory_space<vmem>>, vector<128x64xf32>
    %cst_8 = arith.constant dense<0.000000e+00> : vector<128x128xf32>
    %10 = tpu.matmul %9, %8, %cst_8 {dimension_numbers = #tpu.dot_dimension_numbers<[1], [0], [0], [1], [0, 0, 1, 1], [], []>} : vector<128x64xf32>, vector<64x128xf32>, vector<128x128xf32> -> vector<128x128xf32>
    %c0_9 = arith.constant 0 : index
    %c0_10 = arith.constant 0 : index
    %11 = vector.load %arg5[%c0_9, %c0_10] : memref<128x1xf32, #tpu.memory_space<vmem>>, vector<128x1xf32>
    %12 = vector.broadcast %11 : vector<128x1xf32> to vector<128x128xf32>
    %13 = arith.addf %10, %12 : vector<128x128xf32>
    %cst_11 = arith.constant 0.00999999977 : f32
    %14 = vector.broadcast %cst_11 : f32 to vector<128x128xf32>
    %15 = arith.mulf %14, %13 : vector<128x128xf32>
    %16 = arith.maximumf %13, %15 : vector<128x128xf32>
    %c0_12 = arith.constant 0 : index
    %c0_13 = arith.constant 0 : index
    %17 = vector.load %arg6[%c0_12, %c0_13] : memref<64x128xf32, #tpu.memory_space<vmem>>, vector<64x128xf32>
    %cst_14 = arith.constant dense<0.000000e+00> : vector<64x128xf32>
    %18 = tpu.matmul %17, %16, %cst_14 {dimension_numbers = #tpu.dot_dimension_numbers<[1], [0], [0], [1], [0, 0, 1, 1], [], []>} : vector<64x128xf32>, vector<128x128xf32>, vector<64x128xf32> -> vector<64x128xf32>
    %c0_15 = arith.constant 0 : index
    %c0_16 = arith.constant 0 : index
    %19 = vector.load %arg7[%c0_15, %c0_16] : memref<64x1xf32, #tpu.memory_space<vmem>>, vector<64x1xf32>
    %20 = vector.broadcast %19 : vector<64x1xf32> to vector<64x128xf32>
    %21 = arith.addf %18, %20 : vector<64x128xf32>
    %cst_17 = arith.constant 0.00999999977 : f32
    %22 = vector.broadcast %cst_17 : f32 to vector<64x128xf32>
    %23 = arith.mulf %22, %21 : vector<64x128xf32>
    %24 = arith.maximumf %21, %23 : vector<64x128xf32>
    %c0_18 = arith.constant 0 : index
    %c0_19 = arith.constant 0 : index
    %25 = vector.load %arg8[%c0_18, %c0_19] : memref<16x64xf32, #tpu.memory_space<vmem>>, vector<16x64xf32>
    %cst_20 = arith.constant dense<0.000000e+00> : vector<16x128xf32>
    %26 = tpu.matmul %25, %24, %cst_20 {dimension_numbers = #tpu.dot_dimension_numbers<[1], [0], [0], [1], [0, 0, 1, 1], [], []>} : vector<16x64xf32>, vector<64x128xf32>, vector<16x128xf32> -> vector<16x128xf32>
    %c0_21 = arith.constant 0 : index
    %c0_22 = arith.constant 0 : index
    %27 = vector.load %arg9[%c0_21, %c0_22] : memref<16x1xf32, #tpu.memory_space<vmem>>, vector<16x1xf32>
    %28 = vector.broadcast %27 : vector<16x1xf32> to vector<16x128xf32>
    %29 = arith.addf %26, %28 : vector<16x128xf32>
    %cst_23 = arith.constant 0.00999999977 : f32
    %30 = vector.broadcast %cst_23 : f32 to vector<16x128xf32>
    %31 = arith.mulf %30, %29 : vector<16x128xf32>
    %32 = arith.maximumf %29, %31 : vector<16x128xf32>
    %c0_24 = arith.constant 0 : index
    %c0_25 = arith.constant 0 : index
    %33 = vector.load %arg10[%c0_24, %c0_25] : memref<2x16xf32, #tpu.memory_space<vmem>>, vector<2x16xf32>
    %cst_26 = arith.constant dense<0.000000e+00> : vector<2x128xf32>
    %34 = tpu.matmul %33, %32, %cst_26 {dimension_numbers = #tpu.dot_dimension_numbers<[1], [0], [0], [1], [0, 0, 1, 1], [], []>} : vector<2x16xf32>, vector<16x128xf32>, vector<2x128xf32> -> vector<2x128xf32>
    %c0_27 = arith.constant 0 : index
    %c0_28 = arith.constant 0 : index
    %35 = vector.load %arg11[%c0_27, %c0_28] : memref<2x1xf32, #tpu.memory_space<vmem>>, vector<2x1xf32>
    %36 = vector.broadcast %35 : vector<2x1xf32> to vector<2x128xf32>
    %37 = arith.addf %34, %36 : vector<2x128xf32>
    %c0_29 = arith.constant 0 : index
    %c0_30 = arith.constant 0 : index
    %38 = vector.load %arg12[%c0_29, %c0_30] : memref<2x128xf32, #tpu.memory_space<vmem>>, vector<2x128xf32>
    tpu.vector_store %arg12[%c0_29, %c0_30], %37 {strides = array<i32>} : memref<2x128xf32, #tpu.memory_space<vmem>>, vector<2x128xf32>,
    return
  }
  func.func @transform_0(%arg0: i32) -> (i32, i32) {
    %c0_i32 = arith.constant 0 : i32
    %c0_i32_0 = arith.constant 0 : i32
    return %c0_i32, %arg0 : i32, i32
  }
  func.func @transform_1(%arg0: i32) -> (i32, i32) {
    %c0_i32 = arith.constant 0 : i32
    %c0_i32_0 = arith.constant 0 : i32
    %c0_i32_1 = arith.constant 0 : i32
    return %c0_i32, %c0_i32_0 : i32, i32
  }
  func.func @transform_2(%arg0: i32) -> (i32, i32) {
    %c0_i32 = arith.constant 0 : i32
    %c0_i32_0 = arith.constant 0 : i32
    %c0_i32_1 = arith.constant 0 : i32
    return %c0_i32, %c0_i32_0 : i32, i32
  }
  func.func @transform_3(%arg0: i32) -> (i32, i32) {
    %c0_i32 = arith.constant 0 : i32
    %c0_i32_0 = arith.constant 0 : i32
    %c0_i32_1 = arith.constant 0 : i32
    return %c0_i32, %c0_i32_0 : i32, i32
  }
  func.func @transform_4(%arg0: i32) -> (i32, i32) {
    %c0_i32 = arith.constant 0 : i32
    %c0_i32_0 = arith.constant 0 : i32
    %c0_i32_1 = arith.constant 0 : i32
    return %c0_i32, %c0_i32_0 : i32, i32
  }
  func.func @transform_5(%arg0: i32) -> (i32, i32) {
    %c0_i32 = arith.constant 0 : i32
    %c0_i32_0 = arith.constant 0 : i32
    %c0_i32_1 = arith.constant 0 : i32
    return %c0_i32, %c0_i32_0 : i32, i32
  }
  func.func @transform_6(%arg0: i32) -> (i32, i32) {
    %c0_i32 = arith.constant 0 : i32
    %c0_i32_0 = arith.constant 0 : i32
    %c0_i32_1 = arith.constant 0 : i32
    return %c0_i32, %c0_i32_0 : i32, i32
  }
  func.func @transform_7(%arg0: i32) -> (i32, i32) {
    %c0_i32 = arith.constant 0 : i32
    %c0_i32_0 = arith.constant 0 : i32
    %c0_i32_1 = arith.constant 0 : i32
    return %c0_i32, %c0_i32_0 : i32, i32
  }
  func.func @transform_8(%arg0: i32) -> (i32, i32) {
    %c0_i32 = arith.constant 0 : i32
    %c0_i32_0 = arith.constant 0 : i32
    %c0_i32_1 = arith.constant 0 : i32
    return %c0_i32, %c0_i32_0 : i32, i32
  }
  func.func @transform_9(%arg0: i32) -> (i32, i32) {
    %c0_i32 = arith.constant 0 : i32
    %c0_i32_0 = arith.constant 0 : i32
    %c0_i32_1 = arith.constant 0 : i32
    return %c0_i32, %c0_i32_0 : i32, i32
  }
  func.func @transform_10(%arg0: i32) -> (i32, i32) {
    %c0_i32 = arith.constant 0 : i32
    %c0_i32_0 = arith.constant 0 : i32
    %c0_i32_1 = arith.constant 0 : i32
    return %c0_i32, %c0_i32_0 : i32, i32
  }
  func.func @transform_11(%arg0: i32) -> (i32, i32) {
    %c0_i32 = arith.constant 0 : i32
    %c0_i32_0 = arith.constant 0 : i32
    return %c0_i32, %arg0 : i32, i32
  }
}

</mosaic_0001>

<llo_original>
// kernel: tpu_custom_call.1
$region0: #{tpu_custom_call.1}
  #allocation0 [shape = 'u32[]', space=smem, size = 0x4, offset = 0x4, fixed_abs, tag = 'smem constant byte address 0x4 - core index']
  #allocation1 [shape = 'u32[144,128]{1,0:T(1,128)}', space=vmem, size = 0x12000, scoped, tag = 'internal scratch']
  %s0 = inlined_call_operand.hbm [shape: f32[8,128], index: 0, kind: input, shape index: {}]
  %s1 = inlined_call_operand.hbm [shape: f32[16,128], index: 1, kind: input, shape index: {}]
  %s2 = inlined_call_operand.hbm [shape: f32[16,128], index: 2, kind: output, shape index: {}]
  %s3 = sld [smem:[#allocation0]]
  $region49: #{tpu_custom_call.1} parent=0
    _
  %s5 = ssub.s32 1, %s3
  %s6 = scalar_select 0, %s5, %s3
  $region1: #{tpu_custom_call.1} parent=0
    #allocation2 [shape = 'u8[4096]{0}', space=vmem, size = 0x1000, scoped, tag = 'input window, operand 0, single buffered']
    #allocation3 [shape = 's32[2]{0}', space=sflag, size = 0x8, scoped, tag = 'scoped memory for tpu_custom_call.1']
    #allocation4 [shape = 's32[2]{0}', space=sflag, size = 0x8, scoped, tag = 'scoped memory for tpu_custom_call.1']
    #allocation5 [shape = 'u8[8192]{0}', space=vmem, size = 0x2000, scoped, tag = 'input window, operand 1']
    #allocation6 [shape = 's32[2]{0}', space=sflag, size = 0x8, scoped, tag = 'scoped memory for tpu_custom_call.1']
    #allocation7 [shape = 'u8[8192]{0}', space=vmem, size = 0x2000, scoped, tag = 'output window, operand 0']
    %7 = vsyncpa [#allocation3], 0
    %8 = vsyncpa [#allocation6], 0
    %s9 = scalar_lea.sflag [#allocation6], 1
    %10 = vsyncpa %s9, 0
    %11 = vsyncpa [#allocation4], 0
    %s12 = scalar_lea.sflag [#allocation4], 1
    %13 = vsyncpa %s12, 0
    loop: start=0, step=1, limit=4
    $region2: #{tpu_custom_call.1} parent=1 // loop_pre_header
      _
    $region3: #{tpu_custom_call.1} parent=1 // loop_header
      %s15 = sphi 0, %s19
      %p16 = scmp.ge.s32.totalorder %s15, 4
      %s23 = sphi 0, %s23
      %s25 = sphi 0, %s23
      %s26 = sphi 0, %s25
      %s40 = sphi 0, %s26
      %s46 = sphi 0, %s48
      %s49 = sphi 0, %s46
      %s50 = sphi 0, %s49
      %s66 = sphi 0, %s50
      %s72 = sphi 0, %s74
      %s75 = sphi 0, %s72
      %s76 = sphi 0, %s75
      %s92 = sphi 0, %s76
    $region4: #{tpu_custom_call.1} parent=1 // loop_header_branch
      %18 = sbr.rel (%p16) target = $region8
    $region5: #{tpu_custom_call.1} parent=1 // loop_body
      %s20 = ssub.s32 %s15, 1
      %s21 = ssub.s32 %s15, 2
      %s22 = sadd.s32 %s15, 1
      %s24 = sadd.s32 %s23, 1
      %p27 = scmp.eq.s32.totalorder %s15, 1
      %p28 = scmp.ne.s32.totalorder %s23, %s25
      %p29 = scmp.eq.s32.totalorder %s15, 0
      %p30 = por %p28, %p29
      %p31 = scmp.ne.s32.totalorder %s23, %s25
      %p32 = scmp.eq.s32.totalorder %s20, 1
      %p33 = por %p31, %p32
      %p34 = scmp.ne.s32.totalorder %s25, %s26
      %p35 = scmp.eq.s32.totalorder %s20, 0
      %p36 = por %p34, %p35
      %p37 = scmp.ne.s32.totalorder %s25, %s26
      %p38 = scmp.eq.s32.totalorder %s21, 1
      %p39 = por %p37, %p38
      %p41 = scmp.ne.s32.totalorder %s26, %s40
      %p42 = scmp.eq.s32.totalorder %s21, 0
      %p43 = por %p41, %p42
      %s44 = ssub.s32 %s15, %s22
      %p45 = scmp.eq.s32.totalorder %s44, 0
      %s47 = sadd.s32 %s46, 1
      %s48 = scalar_select %p45, %s46, %s47
      %p51 = pneg %p45
      %p52 = scmp.eq.s32.totalorder %s15, 1
      %p53 = por %p51, %p52
      %p54 = scmp.ne.s32.totalorder %s46, %s49
      %p55 = scmp.eq.s32.totalorder %s15, 0
      %p56 = por %p54, %p55
      %p57 = scmp.ne.s32.totalorder %s46, %s49
      %p58 = scmp.eq.s32.totalorder %s20, 1
      %p59 = por %p57, %p58
      %p60 = scmp.ne.s32.totalorder %s49, %s50
      %p61 = scmp.eq.s32.totalorder %s20, 0
      %p62 = por %p60, %p61
      %p63 = scmp.ne.s32.totalorder %s49, %s50
      %p64 = scmp.eq.s32.totalorder %s21, 1
      %p65 = por %p63, %p64
      %p67 = scmp.ne.s32.totalorder %s50, %s66
      %p68 = scmp.eq.s32.totalorder %s21, 0
      %p69 = por %p67, %p68
      %s70 = ssub.s32 %s15, %s22
      %p71 = scmp.eq.s32.totalorder %s70, 0
      %s73 = sadd.s32 %s72, 1
      %s74 = scalar_select %p71, %s72, %s73
      %p77 = pneg %p71
      %p78 = scmp.eq.s32.totalorder %s15, 1
      %p79 = por %p77, %p78
      %p80 = scmp.ne.s32.totalorder %s72, %s75
      %p81 = scmp.eq.s32.totalorder %s15, 0
      %p82 = por %p80, %p81
      %p83 = scmp.ne.s32.totalorder %s72, %s75
      %p84 = scmp.eq.s32.totalorder %s20, 1
      %p85 = por %p83, %p84
      %p86 = scmp.ne.s32.totalorder %s75, %s76
      %p87 = scmp.eq.s32.totalorder %s20, 0
      %p88 = por %p86, %p87
      %p89 = scmp.ne.s32.totalorder %s75, %s76
      %p90 = scmp.eq.s32.totalorder %s21, 1
      %p91 = por %p89, %p90
      %p93 = scmp.ne.s32.totalorder %s76, %s92
      %p94 = scmp.eq.s32.totalorder %s21, 0
      %p95 = por %p93, %p94
      %p96 = scmp.le.s32.totalorder 1, %s15
      %p97 = scmp.lt.s32.totalorder %s15, 3
      %p98 = pnand %p96, %p97
      %p99 = pneg %p98
      // Predicated region
      $region9: #{tpu_custom_call.1} parent=5 // pred_check
        _
      $region10: #{tpu_custom_call.1} parent=5 // pred_check_branch
        %101 = sbr.rel (%p98) target = $region12
      $region11: #{tpu_custom_call.1} parent=5 // pred_region
        %s102 = ssub.s32 %s15, 1
        // Predicated region
        $region13: #{tpu_custom_call.1} parent=11 // pred_check
          %p103 = pneg %p36
        $region14: #{tpu_custom_call.1} parent=11 // pred_check_branch
          %105 = sbr.rel (%p103) target = $region16
        $region15: #{tpu_custom_call.1} parent=11 // pred_region
          %s107 = ssub.s32 128, 128
          %108 = vsyncadd [#allocation3], %s107
          %s110 = sshll.u32 [#allocation2], 4
          %s111 = int_to_ptr.vmem [resolvable:$true] %s110
          %113 = dma.hbm_to_vmem [thread:$0]  %s0, 128, %s111, [#allocation3]
        $region16: #{tpu_custom_call.1} parent=11 // pred_fallthru
          _
      $region12: #{tpu_custom_call.1} parent=5 // pred_fallthru
        _
      %p114 = scmp.lt.s32.totalorder %s15, 2
      // Predicated region
      $region17: #{tpu_custom_call.1} parent=5 // pred_check
        %p115 = pneg %p114
      $region18: #{tpu_custom_call.1} parent=5 // pred_check_branch
        %117 = sbr.rel (%p115) target = $region20
      $region19: #{tpu_custom_call.1} parent=5 // pred_region
        // Predicated region
        $region21: #{tpu_custom_call.1} parent=19 // pred_check
          %p118 = pneg %p56
        $region22: #{tpu_custom_call.1} parent=19 // pred_check_branch
          %120 = sbr.rel (%p118) target = $region24
        $region23: #{tpu_custom_call.1} parent=19 // pred_region
          %s121 = sand.u32 %s46, 1
          %s122 = scalar_lea.sflag [#allocation6], %s121
          %s123 = sand.u32 %s46, 1
          %s124 = smul.addr %s123, 8
          %s125 = scalar_lea.vmem [#allocation5], %s124
          %s127 = ssub.s32 128, 128
          %128 = vsyncadd %s122, %s127
          %s129 = smul.addr %s15, 128
          %s130 = scalar_lea.hbm %s1, %s129
          %s132 = sshll.u32 %s125, 4
          %s133 = int_to_ptr.vmem [resolvable:$true] %s132
          %135 = dma.hbm_to_vmem [thread:$0]  %s130, 128, %s133, %s122
        $region24: #{tpu_custom_call.1} parent=19 // pred_fallthru
          _
      $region20: #{tpu_custom_call.1} parent=5 // pred_fallthru
        _
      %p136 = scmp.le.s32.totalorder 1, %s15
      %p137 = scmp.lt.s32.totalorder %s15, 3
      %p138 = pnand %p136, %p137
      %p139 = pneg %p138
      // Predicated region
      $region25: #{tpu_custom_call.1} parent=5 // pred_check
        _
      $region26: #{tpu_custom_call.1} parent=5 // pred_check_branch
        %141 = sbr.rel (%p138) target = $region28
      $region27: #{tpu_custom_call.1} parent=5 // pred_region
        %s142 = ssub.s32 %s15, 1
        // Predicated region
        $region29: #{tpu_custom_call.1} parent=27 // pred_check
          %p143 = pneg %p36
        $region30: #{tpu_custom_call.1} parent=27 // pred_check_branch
          %145 = sbr.rel (%p143) target = $region32
        $region31: #{tpu_custom_call.1} parent=27 // pred_region
          %146 = dma.done [#allocation3], 128
        $region32: #{tpu_custom_call.1} parent=27 // pred_fallthru
          _
        %s147 = sand.u32 %s49, 1
        %s148 = scalar_lea.sflag [#allocation6], %s147
        %s149 = sand.u32 %s49, 1
        %s150 = smul.addr %s149, 8
        %s151 = scalar_lea.vmem [#allocation5], %s150
        // Predicated region
        $region33: #{tpu_custom_call.1} parent=27 // pred_check
          %p152 = pneg %p62
        $region34: #{tpu_custom_call.1} parent=27 // pred_check_branch
          %154 = sbr.rel (%p152) target = $region36
        $region35: #{tpu_custom_call.1} parent=27 // pred_region
          %155 = dma.done %s148, 128
        $region36: #{tpu_custom_call.1} parent=27 // pred_fallthru
          _
        %p156 = pneg %p36
        %p157 = pneg %p33
        %s158 = sand.u32 %s49, 1
        %s159 = scalar_lea.sflag [#allocation6], %s158
        %s160 = sand.u32 %s49, 1
        %s161 = smul.addr %s160, 8
        %s162 = scalar_lea.vmem [#allocation5], %s161
        %p163 = pneg %p62
        %p164 = pneg %p59
        %p165 = pneg %p88
        %p166 = pneg %p85
        %s167 = sand.u32 %s75, 1
        %s168 = scalar_lea.sflag [#allocation4], %s167
        %s169 = sand.u32 %s75, 1
        %s170 = smul.addr %s169, 8
        %s171 = scalar_lea.vmem [#allocation7], %s170
        %v172 = vld [vmem:[%s151] sm:$0xff]
        %v173 = vld [vmem:[#allocation2] sm:$0xff]
        %v174 = vadd.f32 %v172, %v173
        %175 = vst [vmem:[%s171] sm:$0xff] %v174
        %s176 = sand.u32 %s75, 1
        %s177 = scalar_lea.sflag [#allocation4], %s176
        %s178 = sand.u32 %s75, 1
        %s179 = smul.addr %s178, 8
        %s180 = scalar_lea.vmem [#allocation7], %s179
        // Predicated region
        $region37: #{tpu_custom_call.1} parent=27 // pred_check
          %p181 = pneg %p85
        $region38: #{tpu_custom_call.1} parent=27 // pred_check_branch
          %183 = sbr.rel (%p181) target = $region40
        $region39: #{tpu_custom_call.1} parent=27 // pred_region
          %s185 = ssub.s32 128, 128
          %186 = vsyncadd %s177, %s185
          %s187 = smul.addr %s20, 128
          %s188 = scalar_lea.hbm %s2, %s187
          %s190 = sshll.u32 %s180, 4
          %s191 = int_to_ptr.vmem [resolvable:$true] %s190
          %193 = dma.vmem_to_hbm [thread:$0]  %s191, 128, %s188, %s177
        $region40: #{tpu_custom_call.1} parent=27 // pred_fallthru
          _
      $region28: #{tpu_custom_call.1} parent=5 // pred_fallthru
        _
      %p194 = scmp.le.s32.totalorder 2, %s15
      // Predicated region
      $region41: #{tpu_custom_call.1} parent=5 // pred_check
        %p195 = pneg %p194
      $region42: #{tpu_custom_call.1} parent=5 // pred_check_branch
        %197 = sbr.rel (%p195) target = $region44
      $region43: #{tpu_custom_call.1} parent=5 // pred_region
        %s198 = ssub.s32 %s15, 2
        // Predicated region
        $region45: #{tpu_custom_call.1} parent=43 // pred_check
          %p199 = pneg %p91
        $region46: #{tpu_custom_call.1} parent=43 // pred_check_branch
          %201 = sbr.rel (%p199) target = $region48
        $region47: #{tpu_custom_call.1} parent=43 // pred_region
          %s202 = sand.u32 %s76, 1
          %s203 = scalar_lea.sflag [#allocation4], %s202
          %s204 = sand.u32 %s76, 1
          %s205 = smul.addr %s204, 8
          %s206 = scalar_lea.vmem [#allocation7], %s205
          %207 = dma.done %s203, 128
        $region48: #{tpu_custom_call.1} parent=43 // pred_fallthru
          _
      $region44: #{tpu_custom_call.1} parent=5 // pred_fallthru
        _
    $region6: #{tpu_custom_call.1} parent=1 // loop_footer
      %s19 = sadd.s32 1, %s15
    $region7: #{tpu_custom_call.1} parent=1 // loop_footer_branch
      %14 = sbr.rel target = $region3
    $region8: #{tpu_custom_call.1} parent=1 // loop_exit
      _
    %208 = vsyncpa [#allocation3], 1
    %s209 = scalar_lea.sflag [#allocation3], 1
    %210 = vsyncpa %s209, 1
    %211 = vsyncpa [#allocation6], 1
    %s212 = scalar_lea.sflag [#allocation6], 1
    %213 = vsyncpa %s212, 1
    %214 = vsyncpa [#allocation4], 1
    %s215 = scalar_lea.sflag [#allocation4], 1
    %216 = vsyncpa %s215, 1

// kernel: tpu_custom_call.1
$region0: #{tpu_custom_call.1}
  #allocation0 [shape = 'u32[]', space=smem, size = 0x4, offset = 0x4, fixed_abs, tag = 'smem constant byte address 0x4 - core index']
  #allocation1 [shape = 'u32[144,128]{1,0:T(1,128)}', space=vmem, size = 0x12000, scoped, tag = 'internal scratch']
  %s0 = inlined_call_operand.vmem [shape: f32[8,128], index: 0, kind: input, shape index: {}]
  %s1 = inlined_call_operand.vmem [shape: f32[64,8], index: 1, kind: input, shape index: {}]
  %s2 = inlined_call_operand.vmem [shape: f32[64,1], index: 2, kind: input, shape index: {}]
  %s3 = inlined_call_operand.vmem [shape: f32[128,64], index: 3, kind: input, shape index: {}]
  %s4 = inlined_call_operand.vmem [shape: f32[128,1], index: 4, kind: input, shape index: {}]
  %s5 = inlined_call_operand.vmem [shape: f32[64,128], index: 5, kind: input, shape index: {}]
  %s6 = inlined_call_operand.vmem [shape: f32[64,1], index: 6, kind: input, shape index: {}]
  %s7 = inlined_call_operand.vmem [shape: f32[16,64], index: 7, kind: input, shape index: {}]
  %s8 = inlined_call_operand.vmem [shape: f32[16,1], index: 8, kind: input, shape index: {}]
  %s9 = inlined_call_operand.vmem [shape: f32[2,16], index: 9, kind: input, shape index: {}]
  %s10 = inlined_call_operand.vmem [shape: f32[2,1], index: 10, kind: input, shape index: {}]
  %s11 = inlined_call_operand.hbm [shape: f32[2,128], index: 11, kind: output, shape index: {}]
  %s12 = sld [smem:[#allocation0]]
  $region54: #{tpu_custom_call.1} parent=0
    _
  %s14 = ssub.s32 1, %s12
  %s15 = scalar_select 0, %s14, %s12
  $region1: #{tpu_custom_call.1} parent=0
    #allocation2 [shape = 'u8[1024]{0}', space=vmem, size = 0x400, scoped, tag = 'output window, operand 0, single buffered']
    #allocation3 [shape = 's32[1]{0}', space=sflag, size = 0x4, scoped, tag = 'scoped memory for tpu_custom_call.1']
    %16 = vsyncpa [#allocation3], 0
    // Predicated region
    $region2: #{tpu_custom_call.1} parent=1 // pred_check
      _
    $region3: #{tpu_custom_call.1} parent=1 // pred_check_branch
      %18 = sbr.rel (0) target = $region5
    $region4: #{tpu_custom_call.1} parent=1 // pred_region
      _
    $region5: #{tpu_custom_call.1} parent=1 // pred_fallthru
      _
    // Predicated region
    $region6: #{tpu_custom_call.1} parent=1 // pred_check
      _
    $region7: #{tpu_custom_call.1} parent=1 // pred_check_branch
      %20 = sbr.rel (0) target = $region9
    $region8: #{tpu_custom_call.1} parent=1 // pred_region
      _
    $region9: #{tpu_custom_call.1} parent=1 // pred_fallthru
      _
    // Predicated region
    $region10: #{tpu_custom_call.1} parent=1 // pred_check
      _
    $region11: #{tpu_custom_call.1} parent=1 // pred_check_branch
      %22 = sbr.rel (0) target = $region13
    $region12: #{tpu_custom_call.1} parent=1 // pred_region
      _
    $region13: #{tpu_custom_call.1} parent=1 // pred_fallthru
      _
    // Predicated region
    $region14: #{tpu_custom_call.1} parent=1 // pred_check
      _
    $region15: #{tpu_custom_call.1} parent=1 // pred_check_branch
      %24 = sbr.rel (0) target = $region17
    $region16: #{tpu_custom_call.1} parent=1 // pred_region
      _
    $region17: #{tpu_custom_call.1} parent=1 // pred_fallthru
      _
    // Predicated region
    $region18: #{tpu_custom_call.1} parent=1 // pred_check
      _
    $region19: #{tpu_custom_call.1} parent=1 // pred_check_branch
      %26 = sbr.rel (0) target = $region21
    $region20: #{tpu_custom_call.1} parent=1 // pred_region
      _
    $region21: #{tpu_custom_call.1} parent=1 // pred_fallthru
      _
    // Predicated region
    $region22: #{tpu_custom_call.1} parent=1 // pred_check
      _
    $region23: #{tpu_custom_call.1} parent=1 // pred_check_branch
      %28 = sbr.rel (0) target = $region25
    $region24: #{tpu_custom_call.1} parent=1 // pred_region
      _
    $region25: #{tpu_custom_call.1} parent=1 // pred_fallthru
      _
    // Predicated region
    $region26: #{tpu_custom_call.1} parent=1 // pred_check
      _
    $region27: #{tpu_custom_call.1} parent=1 // pred_check_branch
      %30 = sbr.rel (0) target = $region29
    $region28: #{tpu_custom_call.1} parent=1 // pred_region
      _
    $region29: #{tpu_custom_call.1} parent=1 // pred_fallthru
      _
    // Predicated region
    $region30: #{tpu_custom_call.1} parent=1 // pred_check
      _
    $region31: #{tpu_custom_call.1} parent=1 // pred_check_branch
      %32 = sbr.rel (0) target = $region33
    $region32: #{tpu_custom_call.1} parent=1 // pred_region
      _
    $region33: #{tpu_custom_call.1} parent=1 // pred_fallthru
      _
    // Predicated region
    $region34: #{tpu_custom_call.1} parent=1 // pred_check
      _
    $region35: #{tpu_custom_call.1} parent=1 // pred_check_branch
      %34 = sbr.rel (0) target = $region37
    $region36: #{tpu_custom_call.1} parent=1 // pred_region
      _
    $region37: #{tpu_custom_call.1} parent=1 // pred_fallthru
      _
    // Predicated region
    $region38: #{tpu_custom_call.1} parent=1 // pred_check
      _
    $region39: #{tpu_custom_call.1} parent=1 // pred_check_branch
      %36 = sbr.rel (0) target = $region41
    $region40: #{tpu_custom_call.1} parent=1 // pred_region
      _
    $region41: #{tpu_custom_call.1} parent=1 // pred_fallthru
      _
    // Predicated region
    $region42: #{tpu_custom_call.1} parent=1 // pred_check
      _
    $region43: #{tpu_custom_call.1} parent=1 // pred_check_branch
      %38 = sbr.rel (0) target = $region45
    $region44: #{tpu_custom_call.1} parent=1 // pred_region
      _
    $region45: #{tpu_custom_call.1} parent=1 // pred_fallthru
      _
    %v39 = vld [vmem:[%s0] sm:$0xff]
    %v40 = vld [vmem:[%s1] sm:$0xff]
    %v41 = vld [vmem:[%s1 + $0x8] sm:$0xff]
    %v42 = vld [vmem:[%s1 + $0x10] sm:$0xff]
    %v43 = vld [vmem:[%s1 + $0x18] sm:$0xff]
    %v44 = vld [vmem:[%s1 + $0x20] sm:$0xff]
    %v45 = vld [vmem:[%s1 + $0x28] sm:$0xff]
    %v46 = vld [vmem:[%s1 + $0x30] sm:$0xff]
    %v47 = vld [vmem:[%s1 + $0x38] sm:$0xff]
    %v48 = vld [vmem:[%s2] sm:$0xff]
    %v49 = vld [vmem:[%s2 + $0x8] sm:$0xff]
    %v50 = vld [vmem:[%s2 + $0x10] sm:$0xff]
    %v51 = vld [vmem:[%s2 + $0x18] sm:$0xff]
    %v52 = vld [vmem:[%s2 + $0x20] sm:$0xff]
    %v53 = vld [vmem:[%s2 + $0x28] sm:$0xff]
    %v54 = vld [vmem:[%s2 + $0x30] sm:$0xff]
    %v55 = vld [vmem:[%s2 + $0x38] sm:$0xff]
    %57 = vset.pattern.permute.xlu0 0
    %58 = vperm.xlu0 %57, %v48
    %v59 = vpop.permute.xlu0 %58
    %62 = vset.pattern.permute.xlu0 0
    %63 = vperm.xlu0 %62, %v49
    %v64 = vpop.permute.xlu0 %63
    %67 = vset.pattern.permute.xlu0 0
    %68 = vperm.xlu0 %67, %v50
    %v69 = vpop.permute.xlu0 %68
    %72 = vset.pattern.permute.xlu0 0
    %73 = vperm.xlu0 %72, %v51
    %v74 = vpop.permute.xlu0 %73
    %77 = vset.pattern.permute.xlu0 0
    %78 = vperm.xlu0 %77, %v52
    %v79 = vpop.permute.xlu0 %78
    %82 = vset.pattern.permute.xlu0 0
    %83 = vperm.xlu0 %82, %v53
    %v84 = vpop.permute.xlu0 %83
    %87 = vset.pattern.permute.xlu0 0
    %88 = vperm.xlu0 %87, %v54
    %v89 = vpop.permute.xlu0 %88
    %92 = vset.pattern.permute.xlu0 0
    %93 = vperm.xlu0 %92, %v55
    %v94 = vpop.permute.xlu0 %93
    %vm96 = vcmask 64512
    %v98 = vsel %vm96, %v40, 0
    %v101 = vsel %vm96, %v41, 0
    %v104 = vsel %vm96, %v42, 0
    %v107 = vsel %vm96, %v43, 0
    %v110 = vsel %vm96, %v44, 0
    %v113 = vsel %vm96, %v45, 0
    %v116 = vsel %vm96, %v46, 0
    %v119 = vsel %vm96, %v47, 0
    %121 = vmatprep.subr.mxu0 0.0
    %122 = vmatpush1.msra.mxu0 %v39
    %123 = vmatprep.subr.mxu0 0.0
    %124 = vmatpush1.msra.mxu0 0.0
    %125 = vmatprep.subr.mxu0 0.0
    %126 = vmatpush1.msra.mxu0 0.0
    %127 = vmatprep.subr.mxu0 0.0
    %128 = vmatpush1.msra.mxu0 0.0
    %129 = vmatprep.subr.mxu0 0.0
    %130 = vmatpush1.msra.mxu0 0.0
    %131 = vmatprep.subr.mxu0 0.0
    %132 = vmatpush1.msra.mxu0 0.0
    %133 = vmatprep.subr.mxu0 0.0
    %134 = vmatpush1.msra.mxu0 0.0
    %135 = vmatprep.subr.mxu0 0.0
    %136 = vmatpush1.msra.mxu0 0.0
    %137 = vmatprep.subr.mxu0 0.0
    %138 = vmatpush1.msra.mxu0 0.0
    %139 = vmatprep.subr.mxu0 0.0
    %140 = vmatpush1.msra.mxu0 0.0
    %141 = vmatprep.subr.mxu0 0.0
    %142 = vmatpush1.msra.mxu0 0.0
    %143 = vmatprep.subr.mxu0 0.0
    %144 = vmatpush1.msra.mxu0 0.0
    %145 = vmatprep.subr.mxu0 0.0
    %146 = vmatpush1.msra.mxu0 0.0
    %147 = vmatprep.subr.mxu0 0.0
    %148 = vmatpush1.msra.mxu0 0.0
    %149 = vmatprep.subr.mxu0 0.0
    %150 = vmatpush1.msra.mxu0 0.0
    %151 = vmatprep.subr.mxu0 0.0
    %152 = vmatpush1.msra.mxu0 0.0
    %153 = vmatprep.subr.mxu0 0.0
    %154 = vmatpush1.msra.mxu0 0.0
    %155 = vmatprep.subr.mxu0 0.0
    %156 = vmatpush1.msra.mxu0 0.0
    %157 = vmatprep.subr.mxu0 0.0
    %158 = vmatpush1.msra.mxu0 0.0
    %159 = vmatprep.subr.mxu0 0.0
    %160 = vmatpush1.msra.mxu0 0.0
    %161 = vmatprep.subr.mxu0 0.0
    %162 = vmatpush1.msra.mxu0 0.0
    %163 = vmatprep.subr.mxu0 0.0
    %164 = vmatpush1.msra.mxu0 0.0
    %165 = vmatprep.subr.mxu0 0.0
    %166 = vmatpush1.msra.mxu0 0.0
    %167 = vmatprep.subr.mxu0 0.0
    %168 = vmatpush1.msra.mxu0 0.0
    %169 = vmatprep.subr.mxu0 0.0
    %170 = vmatpush1.msra.mxu0 0.0
    %171 = vmatprep.subr.mxu0 0.0
    %172 = vmatpush1.msra.mxu0 0.0
    %173 = vmatprep.subr.mxu0 0.0
    %174 = vmatpush1.msra.mxu0 0.0
    %175 = vmatprep.subr.mxu0 0.0
    %176 = vmatpush1.msra.mxu0 0.0
    %177 = vmatprep.subr.mxu0 0.0
    %178 = vmatpush1.msra.mxu0 0.0
    %179 = vmatprep.subr.mxu0 0.0
    %180 = vmatpush1.msra.mxu0 0.0
    %181 = vmatprep.subr.mxu0 0.0
    %182 = vmatpush1.msra.mxu0 0.0
    %183 = vmatprep.subr.mxu0 0.0
    %184 = vmatpush1.msra.mxu0 0.0
    %185 = vmatprep.mubr.f32.mxu0 0.0
    %186 = vmatmul.mubr.f32.gmra.mrb[0].mxu0 %v98
    %v187 = vpop.f32.mrb[0].mxu0
    %v188 = vadd.f32 %v59, %v187
    %v189 = vpop.f32.mrb[0].mxu0
    %190 = vmatprep.mubr.f32.mxu0 0.0
    %191 = vmatmul.mubr.f32.gmra.mrb[0].mxu0 %v101
    %v192 = vpop.f32.mrb[0].mxu0
    %v193 = vadd.f32 %v64, %v192
    %v194 = vpop.f32.mrb[0].mxu0
    %195 = vmatprep.mubr.f32.mxu0 0.0
    %196 = vmatmul.mubr.f32.gmra.mrb[0].mxu0 %v104
    %v197 = vpop.f32.mrb[0].mxu0
    %v198 = vadd.f32 %v69, %v197
    %v199 = vpop.f32.mrb[0].mxu0
    %200 = vmatprep.mubr.f32.mxu0 0.0
    %201 = vmatmul.mubr.f32.gmra.mrb[0].mxu0 %v107
    %v202 = vpop.f32.mrb[0].mxu0
    %v203 = vadd.f32 %v74, %v202
    %v204 = vpop.f32.mrb[0].mxu0
    %205 = vmatprep.mubr.f32.mxu0 0.0
    %206 = vmatmul.mubr.f32.gmra.mrb[0].mxu0 %v110
    %v207 = vpop.f32.mrb[0].mxu0
    %v208 = vadd.f32 %v79, %v207
    %v209 = vpop.f32.mrb[0].mxu0
    %210 = vmatprep.mubr.f32.mxu0 0.0
    %211 = vmatmul.mubr.f32.gmra.mrb[0].mxu0 %v113
    %v212 = vpop.f32.mrb[0].mxu0
    %v213 = vadd.f32 %v84, %v212
    %v214 = vpop.f32.mrb[0].mxu0
    %215 = vmatprep.mubr.f32.mxu0 0.0
    %216 = vmatmul.mubr.f32.gmra.mrb[0].mxu0 %v116
    %v217 = vpop.f32.mrb[0].mxu0
    %v218 = vadd.f32 %v89, %v217
    %v219 = vpop.f32.mrb[0].mxu0
    %220 = vmatprep.mubr.f32.mxu0 0.0
    %221 = vmatmul.mubr.f32.gmra.mrb[0].mxu0 %v119
    %v222 = vpop.f32.mrb[0].mxu0
    %v223 = vadd.f32 %v94, %v222
    %v224 = vpop.f32.mrb[0].mxu0
    %225 = vdwg.mxu0
    %v226 = vmul.f32 %v188, 0.01
    %v227 = vmul.f32 %v193, 0.01
    %v228 = vmul.f32 %v198, 0.01
    %v229 = vmul.f32 %v203, 0.01
    %v230 = vmul.f32 %v208, 0.01
    %v231 = vmul.f32 %v213, 0.01
    %v232 = vmul.f32 %v218, 0.01
    %v233 = vmul.f32 %v223, 0.01
    %v234 = vmax.f32 %v188, %v226
    %v235 = vmax.f32 %v193, %v227
    %v236 = vmax.f32 %v198, %v228
    %v237 = vmax.f32 %v203, %v229
    %v238 = vmax.f32 %v208, %v230
    %v239 = vmax.f32 %v213, %v231
    %v240 = vmax.f32 %v218, %v232
    %v241 = vmax.f32 %v223, %v233
    %v242 = vld [vmem:[%s3] sm:$0xff]
    %v243 = vld [vmem:[%s3 + $0x8] sm:$0xff]
    %v244 = vld [vmem:[%s3 + $0x10] sm:$0xff]
    %v245 = vld [vmem:[%s3 + $0x18] sm:$0xff]
    %v246 = vld [vmem:[%s3 + $0x20] sm:$0xff]
    %v247 = vld [vmem:[%s3 + $0x28] sm:$0xff]
    %v248 = vld [vmem:[%s3 + $0x30] sm:$0xff]
    %v249 = vld [vmem:[%s3 + $0x38] sm:$0xff]
    %v250 = vld [vmem:[%s3 + $0x40] sm:$0xff]
    %v251 = vld [vmem:[%s3 + $0x48] sm:$0xff]
    %v252 = vld [vmem:[%s3 + $0x50] sm:$0xff]
    %v253 = vld [vmem:[%s3 + $0x58] sm:$0xff]
    %v254 = vld [vmem:[%s3 + $0x60] sm:$0xff]
    %v255 = vld [vmem:[%s3 + $0x68] sm:$0xff]
    %v256 = vld [vmem:[%s3 + $0x70] sm:$0xff]
    %v257 = vld [vmem:[%s3 + $0x78] sm:$0xff]
    %v258 = vld [vmem:[%s4] sm:$0xff]
    %v259 = vld [vmem:[%s4 + $0x8] sm:$0xff]
    %v260 = vld [vmem:[%s4 + $0x10] sm:$0xff]
    %v261 = vld [vmem:[%s4 + $0x18] sm:$0xff]
    %v262 = vld [vmem:[%s4 + $0x20] sm:$0xff]
    %v263 = vld [vmem:[%s4 + $0x28] sm:$0xff]
    %v264 = vld [vmem:[%s4 + $0x30] sm:$0xff]
    %v265 = vld [vmem:[%s4 + $0x38] sm:$0xff]
    %v266 = vld [vmem:[%s4 + $0x40] sm:$0xff]
    %v267 = vld [vmem:[%s4 + $0x48] sm:$0xff]
    %v268 = vld [vmem:[%s4 + $0x50] sm:$0xff]
    %v269 = vld [vmem:[%s4 + $0x58] sm:$0xff]
    %v270 = vld [vmem:[%s4 + $0x60] sm:$0xff]
    %v271 = vld [vmem:[%s4 + $0x68] sm:$0xff]
    %v272 = vld [vmem:[%s4 + $0x70] sm:$0xff]
    %v273 = vld [vmem:[%s4 + $0x78] sm:$0xff]
    %275 = vset.pattern.permute.xlu0 0
    %276 = vperm.xlu0 %275, %v258
    %v277 = vpop.permute.xlu0 %276
    %280 = vset.pattern.permute.xlu0 0
    %281 = vperm.xlu0 %280, %v259
    %v282 = vpop.permute.xlu0 %281
    %285 = vset.pattern.permute.xlu0 0
    %286 = vperm.xlu0 %285, %v260
    %v287 = vpop.permute.xlu0 %286
    %290 = vset.pattern.permute.xlu0 0
    %291 = vperm.xlu0 %290, %v261
    %v292 = vpop.permute.xlu0 %291
    %295 = vset.pattern.permute.xlu0 0
    %296 = vperm.xlu0 %295, %v262
    %v297 = vpop.permute.xlu0 %296
    %300 = vset.pattern.permute.xlu0 0
    %301 = vperm.xlu0 %300, %v263
    %v302 = vpop.permute.xlu0 %301
    %305 = vset.pattern.permute.xlu0 0
    %306 = vperm.xlu0 %305, %v264
    %v307 = vpop.permute.xlu0 %306
    %310 = vset.pattern.permute.xlu0 0
    %311 = vperm.xlu0 %310, %v265
    %v312 = vpop.permute.xlu0 %311
    %315 = vset.pattern.permute.xlu0 0
    %316 = vperm.xlu0 %315, %v266
    %v317 = vpop.permute.xlu0 %316
    %320 = vset.pattern.permute.xlu0 0
    %321 = vperm.xlu0 %320, %v267
    %v322 = vpop.permute.xlu0 %321
    %325 = vset.pattern.permute.xlu0 0
    %326 = vperm.xlu0 %325, %v268
    %v327 = vpop.permute.xlu0 %326
    %330 = vset.pattern.permute.xlu0 0
    %331 = vperm.xlu0 %330, %v269
    %v332 = vpop.permute.xlu0 %331
    %335 = vset.pattern.permute.xlu0 0
    %336 = vperm.xlu0 %335, %v270
    %v337 = vpop.permute.xlu0 %336
    %340 = vset.pattern.permute.xlu0 0
    %341 = vperm.xlu0 %340, %v271
    %v342 = vpop.permute.xlu0 %341
    %345 = vset.pattern.permute.xlu0 0
    %346 = vperm.xlu0 %345, %v272
    %v347 = vpop.permute.xlu0 %346
    %350 = vset.pattern.permute.xlu0 0
    %351 = vperm.xlu0 %350, %v273
    %v352 = vpop.permute.xlu0 %351
    %vm354 = vcmask 523264
    %v356 = vsel %vm354, %v242, 0
    %v359 = vsel %vm354, %v243, 0
    %v362 = vsel %vm354, %v244, 0
    %v365 = vsel %vm354, %v245, 0
    %v368 = vsel %vm354, %v246, 0
    %v371 = vsel %vm354, %v247, 0
    %v374 = vsel %vm354, %v248, 0
    %v377 = vsel %vm354, %v249, 0
    %v380 = vsel %vm354, %v250, 0
    %v383 = vsel %vm354, %v251, 0
    %v386 = vsel %vm354, %v252, 0
    %v389 = vsel %vm354, %v253, 0
    %v392 = vsel %vm354, %v254, 0
    %v395 = vsel %vm354, %v255, 0
    %v398 = vsel %vm354, %v256, 0
    %v401 = vsel %vm354, %v257, 0
    %403 = vmatprep.subr.mxu0 0.0
    %404 = vmatpush1.msra.mxu0 %v234
    %405 = vmatprep.subr.mxu0 0.0
    %406 = vmatpush1.msra.mxu0 %v235
    %407 = vmatprep.subr.mxu0 0.0
    %408 = vmatpush1.msra.mxu0 %v236
    %409 = vmatprep.subr.mxu0 0.0
    %410 = vmatpush1.msra.mxu0 %v237
    %411 = vmatprep.subr.mxu0 0.0
    %412 = vmatpush1.msra.mxu0 %v238
    %413 = vmatprep.subr.mxu0 0.0
    %414 = vmatpush1.msra.mxu0 %v239
    %415 = vmatprep.subr.mxu0 0.0
    %416 = vmatpush1.msra.mxu0 %v240
    %417 = vmatprep.subr.mxu0 0.0
    %418 = vmatpush1.msra.mxu0 %v241
    %419 = vmatprep.subr.mxu0 0.0
    %420 = vmatpush1.msra.mxu0 0.0
    %421 = vmatprep.subr.mxu0 0.0
    %422 = vmatpush1.msra.mxu0 0.0
    %423 = vmatprep.subr.mxu0 0.0
    %424 = vmatpush1.msra.mxu0 0.0
    %425 = vmatprep.subr.mxu0 0.0
    %426 = vmatpush1.msra.mxu0 0.0
    %427 = vmatprep.subr.mxu0 0.0
    %428 = vmatpush1.msra.mxu0 0.0
    %429 = vmatprep.subr.mxu0 0.0
    %430 = vmatpush1.msra.mxu0 0.0
    %431 = vmatprep.subr.mxu0 0.0
    %432 = vmatpush1.msra.mxu0 0.0
    %433 = vmatprep.subr.mxu0 0.0
    %434 = vmatpush1.msra.mxu0 0.0
    %435 = vmatprep.subr.mxu0 0.0
    %436 = vmatpush1.msra.mxu0 0.0
    %437 = vmatprep.subr.mxu0 0.0
    %438 = vmatpush1.msra.mxu0 0.0
    %439 = vmatprep.subr.mxu0 0.0
    %440 = vmatpush1.msra.mxu0 0.0
    %441 = vmatprep.subr.mxu0 0.0
    %442 = vmatpush1.msra.mxu0 0.0
    %443 = vmatprep.subr.mxu0 0.0
    %444 = vmatpush1.msra.mxu0 0.0
    %445 = vmatprep.subr.mxu0 0.0
    %446 = vmatpush1.msra.mxu0 0.0
    %447 = vmatprep.subr.mxu0 0.0
    %448 = vmatpush1.msra.mxu0 0.0
    %449 = vmatprep.subr.mxu0 0.0
    %450 = vmatpush1.msra.mxu0 0.0
    %451 = vmatprep.subr.mxu0 0.0
    %452 = vmatpush1.msra.mxu0 0.0
    %453 = vmatprep.subr.mxu0 0.0
    %454 = vmatpush1.msra.mxu0 0.0
    %455 = vmatprep.subr.mxu0 0.0
    %456 = vmatpush1.msra.mxu0 0.0
    %457 = vmatprep.subr.mxu0 0.0
    %458 = vmatpush1.msra.mxu0 0.0
    %459 = vmatprep.subr.mxu0 0.0
    %460 = vmatpush1.msra.mxu0 0.0
    %461 = vmatprep.subr.mxu0 0.0
    %462 = vmatpush1.msra.mxu0 0.0
    %463 = vmatprep.subr.mxu0 0.0
    %464 = vmatpush1.msra.mxu0 0.0
    %465 = vmatprep.subr.mxu0 0.0
    %466 = vmatpush1.msra.mxu0 0.0
    %467 = vmatprep.mubr.f32.mxu0 0.0
    %468 = vmatmul.mubr.f32.gmra.mrb[0].mxu0 %v356
    %v469 = vpop.f32.mrb[0].mxu0
    %v470 = vadd.f32 %v277, %v469
    %v471 = vpop.f32.mrb[0].mxu0
    %472 = vmatprep.mubr.f32.mxu0 0.0
    %473 = vmatmul.mubr.f32.gmra.mrb[0].mxu0 %v359
    %v474 = vpop.f32.mrb[0].mxu0
    %v475 = vadd.f32 %v282, %v474
    %v476 = vpop.f32.mrb[0].mxu0
    %477 = vmatprep.mubr.f32.mxu0 0.0
    %478 = vmatmul.mubr.f32.gmra.mrb[0].mxu0 %v362
    %v479 = vpop.f32.mrb[0].mxu0
    %v480 = vadd.f32 %v287, %v479
    %v481 = vpop.f32.mrb[0].mxu0
    %482 = vmatprep.mubr.f32.mxu0 0.0
    %483 = vmatmul.mubr.f32.gmra.mrb[0].mxu0 %v365
    %v484 = vpop.f32.mrb[0].mxu0
    %v485 = vadd.f32 %v292, %v484
    %v486 = vpop.f32.mrb[0].mxu0
    %487 = vmatprep.mubr.f32.mxu0 0.0
    %488 = vmatmul.mubr.f32.gmra.mrb[0].mxu0 %v368
    %v489 = vpop.f32.mrb[0].mxu0
    %v490 = vadd.f32 %v297, %v489
    %v491 = vpop.f32.mrb[0].mxu0
    %492 = vmatprep.mubr.f32.mxu0 0.0
    %493 = vmatmul.mubr.f32.gmra.mrb[0].mxu0 %v371
    %v494 = vpop.f32.mrb[0].mxu0
    %v495 = vadd.f32 %v302, %v494
    %v496 = vpop.f32.mrb[0].mxu0
    %497 = vmatprep.mubr.f32.mxu0 0.0
    %498 = vmatmul.mubr.f32.gmra.mrb[0].mxu0 %v374
    %v499 = vpop.f32.mrb[0].mxu0
    %v500 = vadd.f32 %v307, %v499
    %v501 = vpop.f32.mrb[0].mxu0
    %502 = vmatprep.mubr.f32.mxu0 0.0
    %503 = vmatmul.mubr.f32.gmra.mrb[0].mxu0 %v377
    %v504 = vpop.f32.mrb[0].mxu0
    %v505 = vadd.f32 %v312, %v504
    %v506 = vpop.f32.mrb[0].mxu0
    %507 = vmatprep.mubr.f32.mxu0 0.0
    %508 = vmatmul.mubr.f32.gmra.mrb[0].mxu0 %v380
    %v509 = vpop.f32.mrb[0].mxu0
    %v510 = vadd.f32 %v317, %v509
    %v511 = vpop.f32.mrb[0].mxu0
    %512 = vmatprep.mubr.f32.mxu0 0.0
    %513 = vmatmul.mubr.f32.gmra.mrb[0].mxu0 %v383
    %v514 = vpop.f32.mrb[0].mxu0
    %v515 = vadd.f32 %v322, %v514
    %v516 = vpop.f32.mrb[0].mxu0
    %517 = vmatprep.mubr.f32.mxu0 0.0
    %518 = vmatmul.mubr.f32.gmra.mrb[0].mxu0 %v386
    %v519 = vpop.f32.mrb[0].mxu0
    %v520 = vadd.f32 %v327, %v519
    %v521 = vpop.f32.mrb[0].mxu0
    %522 = vmatprep.mubr.f32.mxu0 0.0
    %523 = vmatmul.mubr.f32.gmra.mrb[0].mxu0 %v389
    %v524 = vpop.f32.mrb[0].mxu0
    %v525 = vadd.f32 %v332, %v524
    %v526 = vpop.f32.mrb[0].mxu0
    %527 = vmatprep.mubr.f32.mxu0 0.0
    %528 = vmatmul.mubr.f32.gmra.mrb[0].mxu0 %v392
    %v529 = vpop.f32.mrb[0].mxu0
    %v530 = vadd.f32 %v337, %v529
    %v531 = vpop.f32.mrb[0].mxu0
    %532 = vmatprep.mubr.f32.mxu0 0.0
    %533 = vmatmul.mubr.f32.gmra.mrb[0].mxu0 %v395
    %v534 = vpop.f32.mrb[0].mxu0
    %v535 = vadd.f32 %v342, %v534
    %v536 = vpop.f32.mrb[0].mxu0
    %537 = vmatprep.mubr.f32.mxu0 0.0
    %538 = vmatmul.mubr.f32.gmra.mrb[0].mxu0 %v398
    %v539 = vpop.f32.mrb[0].mxu0
    %v540 = vadd.f32 %v347, %v539
    %v541 = vpop.f32.mrb[0].mxu0
    %542 = vmatprep.mubr.f32.mxu0 0.0
    %543 = vmatmul.mubr.f32.gmra.mrb[0].mxu0 %v401
    %v544 = vpop.f32.mrb[0].mxu0
    %v545 = vadd.f32 %v352, %v544
    %v546 = vpop.f32.mrb[0].mxu0
    %547 = vdwg.mxu0
    %v548 = vmul.f32 %v470, 0.01
    %v549 = vmul.f32 %v475, 0.01
    %v550 = vmul.f32 %v480, 0.01
    %v551 = vmul.f32 %v485, 0.01
    %v552 = vmul.f32 %v490, 0.01
    %v553 = vmul.f32 %v495, 0.01
    %v554 = vmul.f32 %v500, 0.01
    %v555 = vmul.f32 %v505, 0.01
    %v556 = vmul.f32 %v510, 0.01
    %v557 = vmul.f32 %v515, 0.01
    %v558 = vmul.f32 %v520, 0.01
    %v559 = vmul.f32 %v525, 0.01
    %v560 = vmul.f32 %v530, 0.01
    %v561 = vmul.f32 %v535, 0.01
    %v562 = vmul.f32 %v540, 0.01
    %v563 = vmul.f32 %v545, 0.01
    %v564 = vmax.f32 %v470, %v548
    %v565 = vmax.f32 %v475, %v549
    %v566 = vmax.f32 %v480, %v550
    %v567 = vmax.f32 %v485, %v551
    %v568 = vmax.f32 %v490, %v552
    %v569 = vmax.f32 %v495, %v553
    %v570 = vmax.f32 %v500, %v554
    %v571 = vmax.f32 %v505, %v555
    %v572 = vmax.f32 %v510, %v556
    %v573 = vmax.f32 %v515, %v557
    %v574 = vmax.f32 %v520, %v558
    %v575 = vmax.f32 %v525, %v559
    %v576 = vmax.f32 %v530, %v560
    %v577 = vmax.f32 %v535, %v561
    %v578 = vmax.f32 %v540, %v562
    %v579 = vmax.f32 %v545, %v563
    %v580 = vld [vmem:[%s5] sm:$0xff]
    %v581 = vld [vmem:[%s5 + $0x8] sm:$0xff]
    %v582 = vld [vmem:[%s5 + $0x10] sm:$0xff]
    %v583 = vld [vmem:[%s5 + $0x18] sm:$0xff]
    %v584 = vld [vmem:[%s5 + $0x20] sm:$0xff]
    %v585 = vld [vmem:[%s5 + $0x28] sm:$0xff]
    %v586 = vld [vmem:[%s5 + $0x30] sm:$0xff]
    %v587 = vld [vmem:[%s5 + $0x38] sm:$0xff]
    %v588 = vld [vmem:[%s6] sm:$0xff]
    %v589 = vld [vmem:[%s6 + $0x8] sm:$0xff]
    %v590 = vld [vmem:[%s6 + $0x10] sm:$0xff]
    %v591 = vld [vmem:[%s6 + $0x18] sm:$0xff]
    %v592 = vld [vmem:[%s6 + $0x20] sm:$0xff]
    %v593 = vld [vmem:[%s6 + $0x28] sm:$0xff]
    %v594 = vld [vmem:[%s6 + $0x30] sm:$0xff]
    %v595 = vld [vmem:[%s6 + $0x38] sm:$0xff]
    %597 = vset.pattern.permute.xlu0 0
    %598 = vperm.xlu0 %597, %v588
    %v599 = vpop.permute.xlu0 %598
    %602 = vset.pattern.permute.xlu0 0
    %603 = vperm.xlu0 %602, %v589
    %v604 = vpop.permute.xlu0 %603
    %607 = vset.pattern.permute.xlu0 0
    %608 = vperm.xlu0 %607, %v590
    %v609 = vpop.permute.xlu0 %608
    %612 = vset.pattern.permute.xlu0 0
    %613 = vperm.xlu0 %612, %v591
    %v614 = vpop.permute.xlu0 %613
    %617 = vset.pattern.permute.xlu0 0
    %618 = vperm.xlu0 %617, %v592
    %v619 = vpop.permute.xlu0 %618
    %622 = vset.pattern.permute.xlu0 0
    %623 = vperm.xlu0 %622, %v593
    %v624 = vpop.permute.xlu0 %623
    %627 = vset.pattern.permute.xlu0 0
    %628 = vperm.xlu0 %627, %v594
    %v629 = vpop.permute.xlu0 %628
    %632 = vset.pattern.permute.xlu0 0
    %633 = vperm.xlu0 %632, %v595
    %v634 = vpop.permute.xlu0 %633
    %636 = vmatprep.subr.mxu0 0.0
    %637 = vmatpush1.msra.mxu0 %v564
    %638 = vmatprep.subr.mxu0 0.0
    %639 = vmatpush1.msra.mxu0 %v565
    %640 = vmatprep.subr.mxu0 0.0
    %641 = vmatpush1.msra.mxu0 %v566
    %642 = vmatprep.subr.mxu0 0.0
    %643 = vmatpush1.msra.mxu0 %v567
    %644 = vmatprep.subr.mxu0 0.0
    %645 = vmatpush1.msra.mxu0 %v568
    %646 = vmatprep.subr.mxu0 0.0
    %647 = vmatpush1.msra.mxu0 %v569
    %648 = vmatprep.subr.mxu0 0.0
    %649 = vmatpush1.msra.mxu0 %v570
    %650 = vmatprep.subr.mxu0 0.0
    %651 = vmatpush1.msra.mxu0 %v571
    %652 = vmatprep.subr.mxu0 0.0
    %653 = vmatpush1.msra.mxu0 %v572
    %654 = vmatprep.subr.mxu0 0.0
    %655 = vmatpush1.msra.mxu0 %v573
    %656 = vmatprep.subr.mxu0 0.0
    %657 = vmatpush1.msra.mxu0 %v574
    %658 = vmatprep.subr.mxu0 0.0
    %659 = vmatpush1.msra.mxu0 %v575
    %660 = vmatprep.subr.mxu0 0.0
    %661 = vmatpush1.msra.mxu0 %v576
    %662 = vmatprep.subr.mxu0 0.0
    %663 = vmatpush1.msra.mxu0 %v577
    %664 = vmatprep.subr.mxu0 0.0
    %665 = vmatpush1.msra.mxu0 %v578
    %666 = vmatprep.subr.mxu0 0.0
    %667 = vmatpush1.msra.mxu0 %v579
    %668 = vmatprep.subr.mxu0 0.0
    %669 = vmatpush1.msra.mxu0 0.0
    %670 = vmatprep.subr.mxu0 0.0
    %671 = vmatpush1.msra.mxu0 0.0
    %672 = vmatprep.subr.mxu0 0.0
    %673 = vmatpush1.msra.mxu0 0.0
    %674 = vmatprep.subr.mxu0 0.0
    %675 = vmatpush1.msra.mxu0 0.0
    %676 = vmatprep.subr.mxu0 0.0
    %677 = vmatpush1.msra.mxu0 0.0
    %678 = vmatprep.subr.mxu0 0.0
    %679 = vmatpush1.msra.mxu0 0.0
    %680 = vmatprep.subr.mxu0 0.0
    %681 = vmatpush1.msra.mxu0 0.0
    %682 = vmatprep.subr.mxu0 0.0
    %683 = vmatpush1.msra.mxu0 0.0
    %684 = vmatprep.subr.mxu0 0.0
    %685 = vmatpush1.msra.mxu0 0.0
    %686 = vmatprep.subr.mxu0 0.0
    %687 = vmatpush1.msra.mxu0 0.0
    %688 = vmatprep.subr.mxu0 0.0
    %689 = vmatpush1.msra.mxu0 0.0
    %690 = vmatprep.subr.mxu0 0.0
    %691 = vmatpush1.msra.mxu0 0.0
    %692 = vmatprep.subr.mxu0 0.0
    %693 = vmatpush1.msra.mxu0 0.0
    %694 = vmatprep.subr.mxu0 0.0
    %695 = vmatpush1.msra.mxu0 0.0
    %696 = vmatprep.subr.mxu0 0.0
    %697 = vmatpush1.msra.mxu0 0.0
    %698 = vmatprep.subr.mxu0 0.0
    %699 = vmatpush1.msra.mxu0 0.0
    %700 = vmatprep.mubr.f32.mxu0 0.0
    %701 = vmatmul.mubr.f32.gmra.mrb[0].mxu0 %v580
    %v702 = vpop.f32.mrb[0].mxu0
    %v703 = vadd.f32 %v599, %v702
    %v704 = vpop.f32.mrb[0].mxu0
    %705 = vmatprep.mubr.f32.mxu0 0.0
    %706 = vmatmul.mubr.f32.gmra.mrb[0].mxu0 %v581
    %v707 = vpop.f32.mrb[0].mxu0
    %v708 = vadd.f32 %v604, %v707
    %v709 = vpop.f32.mrb[0].mxu0
    %710 = vmatprep.mubr.f32.mxu0 0.0
    %711 = vmatmul.mubr.f32.gmra.mrb[0].mxu0 %v582
    %v712 = vpop.f32.mrb[0].mxu0
    %v713 = vadd.f32 %v609, %v712
    %v714 = vpop.f32.mrb[0].mxu0
    %715 = vmatprep.mubr.f32.mxu0 0.0
    %716 = vmatmul.mubr.f32.gmra.mrb[0].mxu0 %v583
    %v717 = vpop.f32.mrb[0].mxu0
    %v718 = vadd.f32 %v614, %v717
    %v719 = vpop.f32.mrb[0].mxu0
    %720 = vmatprep.mubr.f32.mxu0 0.0
    %721 = vmatmul.mubr.f32.gmra.mrb[0].mxu0 %v584
    %v722 = vpop.f32.mrb[0].mxu0
    %v723 = vadd.f32 %v619, %v722
    %v724 = vpop.f32.mrb[0].mxu0
    %725 = vmatprep.mubr.f32.mxu0 0.0
    %726 = vmatmul.mubr.f32.gmra.mrb[0].mxu0 %v585
    %v727 = vpop.f32.mrb[0].mxu0
    %v728 = vadd.f32 %v624, %v727
    %v729 = vpop.f32.mrb[0].mxu0
    %730 = vmatprep.mubr.f32.mxu0 0.0
    %731 = vmatmul.mubr.f32.gmra.mrb[0].mxu0 %v586
    %v732 = vpop.f32.mrb[0].mxu0
    %v733 = vadd.f32 %v629, %v732
    %v734 = vpop.f32.mrb[0].mxu0
    %735 = vmatprep.mubr.f32.mxu0 0.0
    %736 = vmatmul.mubr.f32.gmra.mrb[0].mxu0 %v587
    %v737 = vpop.f32.mrb[0].mxu0
    %v738 = vadd.f32 %v634, %v737
    %v739 = vpop.f32.mrb[0].mxu0
    %740 = vdwg.mxu0
    %v741 = vmul.f32 %v703, 0.01
    %v742 = vmul.f32 %v708, 0.01
    %v743 = vmul.f32 %v713, 0.01
    %v744 = vmul.f32 %v718, 0.01
    %v745 = vmul.f32 %v723, 0.01
    %v746 = vmul.f32 %v728, 0.01
    %v747 = vmul.f32 %v733, 0.01
    %v748 = vmul.f32 %v738, 0.01
    %v749 = vmax.f32 %v703, %v741
    %v750 = vmax.f32 %v708, %v742
    %v751 = vmax.f32 %v713, %v743
    %v752 = vmax.f32 %v718, %v744
    %v753 = vmax.f32 %v723, %v745
    %v754 = vmax.f32 %v728, %v746
    %v755 = vmax.f32 %v733, %v747
    %v756 = vmax.f32 %v738, %v748
    %v757 = vld [vmem:[%s7] sm:$0xff]
    %v758 = vld [vmem:[%s7 + $0x8] sm:$0xff]
    %v759 = vld [vmem:[%s8] sm:$0xff]
    %v760 = vld [vmem:[%s8 + $0x8] sm:$0xff]
    %762 = vset.pattern.permute.xlu0 0
    %763 = vperm.xlu0 %762, %v759
    %v764 = vpop.permute.xlu0 %763
    %767 = vset.pattern.permute.xlu0 0
    %768 = vperm.xlu0 %767, %v760
    %v769 = vpop.permute.xlu0 %768
    %v772 = vsel %vm354, %v757, 0
    %v775 = vsel %vm354, %v758, 0
    %777 = vmatprep.subr.mxu0 0.0
    %778 = vmatpush1.msra.mxu0 %v749
    %779 = vmatprep.subr.mxu0 0.0
    %780 = vmatpush1.msra.mxu0 %v750
    %781 = vmatprep.subr.mxu0 0.0
    %782 = vmatpush1.msra.mxu0 %v751
    %783 = vmatprep.subr.mxu0 0.0
    %784 = vmatpush1.msra.mxu0 %v752
    %785 = vmatprep.subr.mxu0 0.0
    %786 = vmatpush1.msra.mxu0 %v753
    %787 = vmatprep.subr.mxu0 0.0
    %788 = vmatpush1.msra.mxu0 %v754
    %789 = vmatprep.subr.mxu0 0.0
    %790 = vmatpush1.msra.mxu0 %v755
    %791 = vmatprep.subr.mxu0 0.0
    %792 = vmatpush1.msra.mxu0 %v756
    %793 = vmatprep.subr.mxu0 0.0
    %794 = vmatpush1.msra.mxu0 0.0
    %795 = vmatprep.subr.mxu0 0.0
    %796 = vmatpush1.msra.mxu0 0.0
    %797 = vmatprep.subr.mxu0 0.0
    %798 = vmatpush1.msra.mxu0 0.0
    %799 = vmatprep.subr.mxu0 0.0
    %800 = vmatpush1.msra.mxu0 0.0
    %801 = vmatprep.subr.mxu0 0.0
    %802 = vmatpush1.msra.mxu0 0.0
    %803 = vmatprep.subr.mxu0 0.0
    %804 = vmatpush1.msra.mxu0 0.0
    %805 = vmatprep.subr.mxu0 0.0
    %806 = vmatpush1.msra.mxu0 0.0
    %807 = vmatprep.subr.mxu0 0.0
    %808 = vmatpush1.msra.mxu0 0.0
    %809 = vmatprep.subr.mxu0 0.0
    %810 = vmatpush1.msra.mxu0 0.0
    %811 = vmatprep.subr.mxu0 0.0
    %812 = vmatpush1.msra.mxu0 0.0
    %813 = vmatprep.subr.mxu0 0.0
    %814 = vmatpush1.msra.mxu0 0.0
    %815 = vmatprep.subr.mxu0 0.0
    %816 = vmatpush1.msra.mxu0 0.0
    %817 = vmatprep.subr.mxu0 0.0
    %818 = vmatpush1.msra.mxu0 0.0
    %819 = vmatprep.subr.mxu0 0.0
    %820 = vmatpush1.msra.mxu0 0.0
    %821 = vmatprep.subr.mxu0 0.0
    %822 = vmatpush1.msra.mxu0 0.0
    %823 = vmatprep.subr.mxu0 0.0
    %824 = vmatpush1.msra.mxu0 0.0
    %825 = vmatprep.subr.mxu0 0.0
    %826 = vmatpush1.msra.mxu0 0.0
    %827 = vmatprep.subr.mxu0 0.0
    %828 = vmatpush1.msra.mxu0 0.0
    %829 = vmatprep.subr.mxu0 0.0
    %830 = vmatpush1.msra.mxu0 0.0
    %831 = vmatprep.subr.mxu0 0.0
    %832 = vmatpush1.msra.mxu0 0.0
    %833 = vmatprep.subr.mxu0 0.0
    %834 = vmatpush1.msra.mxu0 0.0
    %835 = vmatprep.subr.mxu0 0.0
    %836 = vmatpush1.msra.mxu0 0.0
    %837 = vmatprep.subr.mxu0 0.0
    %838 = vmatpush1.msra.mxu0 0.0
    %839 = vmatprep.subr.mxu0 0.0
    %840 = vmatpush1.msra.mxu0 0.0
    %841 = vmatprep.mubr.f32.mxu0 0.0
    %842 = vmatmul.mubr.f32.gmra.mrb[0].mxu0 %v772
    %v843 = vpop.f32.mrb[0].mxu0
    %v844 = vadd.f32 %v764, %v843
    %v845 = vpop.f32.mrb[0].mxu0
    %846 = vmatprep.mubr.f32.mxu0 0.0
    %847 = vmatmul.mubr.f32.gmra.mrb[0].mxu0 %v775
    %v848 = vpop.f32.mrb[0].mxu0
    %v849 = vadd.f32 %v769, %v848
    %v850 = vpop.f32.mrb[0].mxu0
    %851 = vdwg.mxu0
    %v852 = vmul.f32 %v844, 0.01
    %v853 = vmul.f32 %v849, 0.01
    %v854 = vmax.f32 %v844, %v852
    %v855 = vmax.f32 %v849, %v853
    %v856 = vld [vmem:[%s9] sm:$0x3]
    %v857 = vld [vmem:[%s10] sm:$0x3]
    %859 = vset.pattern.permute.xlu0 0
    %860 = vperm.xlu0 %859, %v857
    %v861 = vpop.permute.xlu0 %860
    %vm863 = vcmask 130048
    %v865 = vsel %vm863, %v856, 0
    %867 = vmatprep.subr.mxu0 0.0
    %868 = vmatpush1.msra.mxu0 %v854
    %869 = vmatprep.subr.mxu0 0.0
    %870 = vmatpush1.msra.mxu0 %v855
    %871 = vmatprep.subr.mxu0 0.0
    %872 = vmatpush1.msra.mxu0 0.0
    %873 = vmatprep.subr.mxu0 0.0
    %874 = vmatpush1.msra.mxu0 0.0
    %875 = vmatprep.subr.mxu0 0.0
    %876 = vmatpush1.msra.mxu0 0.0
    %877 = vmatprep.subr.mxu0 0.0
    %878 = vmatpush1.msra.mxu0 0.0
    %879 = vmatprep.subr.mxu0 0.0
    %880 = vmatpush1.msra.mxu0 0.0
    %881 = vmatprep.subr.mxu0 0.0
    %882 = vmatpush1.msra.mxu0 0.0
    %883 = vmatprep.subr.mxu0 0.0
    %884 = vmatpush1.msra.mxu0 0.0
    %885 = vmatprep.subr.mxu0 0.0
    %886 = vmatpush1.msra.mxu0 0.0
    %887 = vmatprep.subr.mxu0 0.0
    %888 = vmatpush1.msra.mxu0 0.0
    %889 = vmatprep.subr.mxu0 0.0
    %890 = vmatpush1.msra.mxu0 0.0
    %891 = vmatprep.subr.mxu0 0.0
    %892 = vmatpush1.msra.mxu0 0.0
    %893 = vmatprep.subr.mxu0 0.0
    %894 = vmatpush1.msra.mxu0 0.0
    %895 = vmatprep.subr.mxu0 0.0
    %896 = vmatpush1.msra.mxu0 0.0
    %897 = vmatprep.subr.mxu0 0.0
    %898 = vmatpush1.msra.mxu0 0.0
    %899 = vmatprep.subr.mxu0 0.0
    %900 = vmatpush1.msra.mxu0 0.0
    %901 = vmatprep.subr.mxu0 0.0
    %902 = vmatpush1.msra.mxu0 0.0
    %903 = vmatprep.subr.mxu0 0.0
    %904 = vmatpush1.msra.mxu0 0.0
    %905 = vmatprep.subr.mxu0 0.0
    %906 = vmatpush1.msra.mxu0 0.0
    %907 = vmatprep.subr.mxu0 0.0
    %908 = vmatpush1.msra.mxu0 0.0
    %909 = vmatprep.subr.mxu0 0.0
    %910 = vmatpush1.msra.mxu0 0.0
    %911 = vmatprep.subr.mxu0 0.0
    %912 = vmatpush1.msra.mxu0 0.0
    %913 = vmatprep.subr.mxu0 0.0
    %914 = vmatpush1.msra.mxu0 0.0
    %915 = vmatprep.subr.mxu0 0.0
    %916 = vmatpush1.msra.mxu0 0.0
    %917 = vmatprep.subr.mxu0 0.0
    %918 = vmatpush1.msra.mxu0 0.0
    %919 = vmatprep.subr.mxu0 0.0
    %920 = vmatpush1.msra.mxu0 0.0
    %921 = vmatprep.subr.mxu0 0.0
    %922 = vmatpush1.msra.mxu0 0.0
    %923 = vmatprep.subr.mxu0 0.0
    %924 = vmatpush1.msra.mxu0 0.0
    %925 = vmatprep.subr.mxu0 0.0
    %926 = vmatpush1.msra.mxu0 0.0
    %927 = vmatprep.subr.mxu0 0.0
    %928 = vmatpush1.msra.mxu0 0.0
    %929 = vmatprep.subr.mxu0 0.0
    %930 = vmatpush1.msra.mxu0 0.0
    %931 = vmatprep.mubr.f32.mxu0 0.0
    %932 = vmatmul.mubr.f32.gmra.mrb[0].mxu0 %v865
    %v933 = vpop.f32.mrb[0].mxu0
    %v934 = vadd.f32 %v861, %v933
    %v935 = vpop.f32.mrb[0].mxu0
    %936 = vdwg.mxu0
    %937 = vst [vmem:[#allocation2] sm:$0x3] %v934
    // Predicated region
    $region46: #{tpu_custom_call.1} parent=1 // pred_check
      _
    $region47: #{tpu_custom_call.1} parent=1 // pred_check_branch
      %939 = sbr.rel (0) target = $region49
    $region48: #{tpu_custom_call.1} parent=1 // pred_region
      %s941 = ssub.s32 32, 32
      %942 = vsyncadd [#allocation3], %s941
      %s944 = sshll.u32 [#allocation2], 4
      %s945 = int_to_ptr.vmem [resolvable:$true] %s944
      %947 = dma.vmem_to_hbm [thread:$0]  %s945, 32, %s11, [#allocation3]
    $region49: #{tpu_custom_call.1} parent=1 // pred_fallthru
      _
    // Predicated region
    $region50: #{tpu_custom_call.1} parent=1 // pred_check
      _
    $region51: #{tpu_custom_call.1} parent=1 // pred_check_branch
      %949 = sbr.rel (0) target = $region53
    $region52: #{tpu_custom_call.1} parent=1 // pred_region
      %950 = dma.done [#allocation3], 32
    $region53: #{tpu_custom_call.1} parent=1 // pred_fallthru
      _
    %951 = vsyncpa [#allocation3], 1

</llo_original>
